<compile_context>
chip_gen: v6e
topology: v6e:2x2x1
jax: 0.10.0
libtpu: 0.0.40
codegen_flags: <defaults>
</compile_context>

<pallas_src>
import functools

import jax
import jax.numpy as jnp
import numpy as np
from jax.experimental import pallas as pl
from jax.experimental.pallas import tpu as pltpu

# MONAI DiceLoss defaults
SMOOTH_NR = 1e-5
SMOOTH_DR = 1e-5

LANE = 128


def _cdiv(a, b):
    return -(-a // b)


def _accumulate(x_raw, lab, valid, inter_ref, denom_ref, ce_ref):
    """Accumulate Dice / CE partial sums for one (C, rows, 128) tile.

    x_raw: (C, TS, 128) logits in input dtype.
    lab:   (TS, 128) int32 labels.
    valid: None (fully valid tile) or (TS, 128) bool mask of real pixels.
    """
    C = x_raw.shape[0]
    x = x_raw.astype(jnp.float32)                       # (C, TS, 128)
    if valid is not None:
        # Zero garbage/padded logits BEFORE max/exp so no NaN/inf survives,
        # and force their labels out of range so the one-hot is all-zero.
        x = jnp.where(valid[None], x, 0.0)
        lab = jnp.where(valid, lab, -1)

    # Channel max / exp / sum as explicit per-channel dense-vreg ops.
    m = x[0]
    for c in range(1, C):
        m = jnp.maximum(m, x[c])                        # (TS, 128)
    xm = x - m[None]                                    # (C, TS, 128), reused for CE
    e = jnp.exp(xm)                                     # (C, TS, 128)
    s = e[0]
    for c in range(1, C):
        s = s + e[c]                                    # (TS, 128)

    inv = pl.reciprocal(s, approx=True)                 # EUP slot
    inv = inv * (2.0 - s * inv)                         # one Newton step -> ~f32 exact
    p = e * inv[None]                                   # softmax probabilities
    log_s = jnp.log(s)                                  # (TS, 128)

    cls = jax.lax.broadcasted_iota(jnp.int32, x.shape, 0)
    onehot = cls == lab[None]                           # (C, TS, 128) bool

    if valid is not None:
        validf = valid.astype(jnp.float32)
        p_den = p * validf[None]                        # keep pred_o unbiased
        log_s = log_s * validf                          # keep CE unbiased
    else:
        p_den = p

    # Dice partial sums (lane reduce, then row reduce -> (C, 1)).
    inter_ct = jnp.sum(jnp.where(onehot, p, 0.0), axis=2)        # (C, TS)
    ground_ct = jnp.sum(jnp.where(onehot, 1.0, 0.0), axis=2)     # (C, TS)
    pred_ct = jnp.sum(p_den, axis=2)                             # (C, TS)

    inter_ref[0, 0] += jnp.sum(inter_ct, axis=1, keepdims=True)              # (C, 1)
    denom_ref[0, 0] += jnp.sum(pred_ct + ground_ct, axis=1, keepdims=True)   # (C, 1)

    # Cross-entropy: per-pixel CE = log(sum exp(x - m)) - (x[label] - m).
    ce_x = jnp.where(onehot[0], xm[0], 0.0)
    for c in range(1, C):
        ce_x = ce_x + jnp.where(onehot[c], xm[c], 0.0)           # (TS, 128)
    ce_ref[0, 0] += jnp.sum(log_s - ce_x, axis=(0, 1), keepdims=True)        # (1, 1)


def _dice_ce_kernel(x_ref, y_ref, inter_ref, denom_ref, ce_ref, *,
                    n_true, tiles_per_chunk, needs_mask_any, num_full_tiles):
    """Per-(batch, split, spatial-tile) partial sums for Dice + CE.

    x_ref:     (1, C, TS, 128) logits (input dtype)
    y_ref:     (1, 1, TS, 128) int8/int32 labels
    inter_ref: (1, 1, C, 1)  running sum_n onehot * softmax
    denom_ref: (1, 1, C, 1)  running sum_n softmax + onehot
    ce_ref:    (1, 1, 1, 1)  running sum_n -log softmax[label]
    """
    p_idx = pl.program_id(1)
    t_idx = pl.program_id(2)

    @pl.when(t_idx == 0)
    def _():
        inter_ref[...] = jnp.zeros_like(inter_ref)
        denom_ref[...] = jnp.zeros_like(denom_ref)
        ce_ref[...] = jnp.zeros_like(ce_ref)

    x = x_ref[0]                                        # (C, TS, 128)
    lab = y_ref[0, 0].astype(jnp.int32)                 # (TS, 128)
    ts = lab.shape[0]

    if not needs_mask_any:
        # Everything is lane/tile aligned: never pay for masking.
        _accumulate(x, lab, None, inter_ref, denom_ref, ce_ref)
    else:
        g = p_idx * tiles_per_chunk + t_idx             # un-clamped global tile id

        @pl.when(g < num_full_tiles)
        def _():
            _accumulate(x, lab, None, inter_ref, denom_ref, ce_ref)

        @pl.when(g >= num_full_tiles)
        def _():
            row = jax.lax.broadcasted_iota(jnp.int32, (ts, LANE), 0)
            col = jax.lax.broadcasted_iota(jnp.int32, (ts, LANE), 1)
            idx = g * (ts * LANE) + row * LANE + col
            valid = idx < n_true
            _accumulate(x, lab, valid, inter_ref, denom_ref, ce_ref)


def dice_ce_loss(y_pred, y_true, alpha=0.5, max_rows_per_tile=None,
                 spatial_splits=None):
    """alpha * DiceLoss(softmax, onehot target) + (1 - alpha) * CrossEntropy."""
    B, C, H, W = y_pred.shape
    N = H * W
    if y_true.ndim == 4:
        y_true = y_true[:, 0]

    S = _cdiv(N, LANE)                                  # spatial rows of 128 pixels
    pad_cols = S * LANE - N

    # --- generation-aware tile sizing ----------------------------------------
    try:
        vmem_cap = int(getattr(pltpu.get_tpu_info(), "vmem_capacity_bytes"))
    except Exception:
        vmem_cap = 0
    if vmem_cap < (16 << 20):
        vmem_cap = 64 << 20                             # conservative (v7x) default
    budget = (vmem_cap * 3) // 4                        # ~96 MiB v5e/v6e, ~48 MiB v7x

    x_isz = jnp.dtype(y_pred.dtype).itemsize
    # Bytes held live in VMEM per spatial row of 128 pixels: double-buffered
    # logit + label tiles, ~8 live f32 (C, ., 128) temporaries (x, xm, e, p,
    # onehot, selects), plus a handful of (., 128) f32 vectors.
    per_row = LANE * (2 * C * x_isz + 2 * 4 + 8 * C * 4 + 8 * 4)

    ts = max(1, min(budget // per_row, 2048))           # <= 256K lanes per tile
    if max_rows_per_tile is not None:
        ts = min(ts, max(1, int(max_rows_per_tile)))
    if ts >= S:
        ts = S                                          # single spatial tile
    else:
        ts = max(32, (ts // 32) * 32)                   # sublane-aligned for int8/bf16
        if ts >= S:
            ts = S
    nblocks = _cdiv(S, ts)

    # Labels as int8 (4x less HBM traffic) when the class count and the block
    # alignment allow it; int32 otherwise.
    lab_dtype = jnp.int8 if (C <= 127 and (ts == S or ts % 32 == 0)) else jnp.int32

    # --- layout: sublane-dense (B, C, S, 128) / (B, 1, S, 128) ----------------
    x = y_pred.reshape(B, C, N)
    y = y_true.reshape(B, N).astype(lab_dtype)
    if pad_cols:
        # Minimal pad (< 128 cols) so the lane-dense reshape exists; padded
        # pixels carry label -1 / logit 0 and are masked out in-kernel anyway.
        x = jnp.pad(x, ((0, 0), (0, 0), (0, pad_cols)))
        y = jnp.pad(y, ((0, 0), (0, pad_cols)), constant_values=-1)
    x = x.reshape(B, C, S, LANE)
    y = y.reshape(B, 1, S, LANE)

    # --- optional spatial split so v7x's 2 TensorCores stay busy at small B ---
    if spatial_splits is None:
        P = 2 if B == 1 else 1
    else:
        P = max(1, int(spatial_splits))
    P = min(P, nblocks)
    t_per = _cdiv(nblocks, P)

    covered = P * t_per * ts * LANE
    needs_mask_any = covered != N
    num_full_tiles = N // (ts * LANE)

    working = per_row * ts
    vmem_limit = int(min(max(working + (8 << 20), 32 << 20), vmem_cap - (4 << 20)))

    cost = pl.CostEstimate(
        flops=int(12 * B * C * S * LANE),
        transcendentals=int(B * S * LANE * (C + 2)),
        bytes_accessed=int(B * C * S * LANE * x_isz
                           + B * S * LANE * jnp.dtype(lab_dtype).itemsize
                           + B * P * (2 * C + 1) * 4),
    )

    kernel = functools.partial(
        _dice_ce_kernel, n_true=N, tiles_per_chunk=t_per,
        needs_mask_any=needs_mask_any, num_full_tiles=num_full_tiles)

    def in_map(b, p, t):
        # Clamp the block index so duplicate (padding) tiles of the last chunk
        # re-read a valid block; their un-clamped global index fully masks them.
        return (b, 0, jnp.minimum(p * t_per + t, nblocks - 1), 0)

    def out_map(b, p, t):
        return (b, p, 0, 0)

    inter, denom, ce_sum = pl.pallas_call(
        kernel,
        out_shape=(
            jax.ShapeDtypeStruct((B, P, C, 1), jnp.float32),
            jax.ShapeDtypeStruct((B, P, C, 1), jnp.float32),
            jax.ShapeDtypeStruct((B, P, 1, 1), jnp.float32),
        ),
        grid_spec=pltpu.PrefetchScalarGridSpec(
            num_scalar_prefetch=0,
            grid=(B, P, t_per),
            in_specs=[
                pl.BlockSpec((1, C, ts, LANE), in_map),
                pl.BlockSpec((1, 1, ts, LANE), in_map),
            ],
            out_specs=[
                pl.BlockSpec((1, 1, C, 1), out_map),
                pl.BlockSpec((1, 1, C, 1), out_map),
                pl.BlockSpec((1, 1, 1, 1), out_map),
            ],
        ),
        compiler_params=pltpu.CompilerParams(
            dimension_semantics=("parallel", "parallel", "arbitrary"),
            vmem_limit_bytes=vmem_limit,
        ),
        cost_estimate=cost,
    )(x, y)

    # Tiny epilogue in plain JAX: fold spatial splits, Dice ratio, means, mix.
    inter = jnp.sum(inter[..., 0], axis=1)              # (B, C)
    denom = jnp.sum(denom[..., 0], axis=1)               # (B, C)
    dice = jnp.mean(1.0 - (2.0 * inter + SMOOTH_NR) / (denom + SMOOTH_DR))
    ce = jnp.sum(ce_sum) / float(B * N)
    return alpha * dice + (1.0 - alpha) * ce


def _reference(y_pred, y_true, alpha=0.5):
    """Pure-JAX reference mirroring MONAI DiceLoss + nn.CrossEntropyLoss."""
    B, C, H, W = y_pred.shape
    p = jax.nn.softmax(y_pred.astype(jnp.float32), axis=1)
    t = jax.nn.one_hot(y_true[:, 0].astype(jnp.int32), C, axis=1, dtype=jnp.float32)
    inter = jnp.sum(t * p, axis=(2, 3))
    denom = jnp.sum(t, axis=(2, 3)) + jnp.sum(p, axis=(2, 3))
    dice = jnp.mean(1.0 - (2.0 * inter + SMOOTH_NR) / (denom + SMOOTH_DR))
    logsm = jax.nn.log_softmax(y_pred.astype(jnp.float32), axis=1)
    ce = -jnp.mean(jnp.sum(t * logsm, axis=1))
    return alpha * dice + (1.0 - alpha) * ce


if __name__ == "__main__":
    key = jax.random.PRNGKey(0)
    ks = jax.random.split(key, 6)

    # Case 1: lane-aligned spatial size (N = 256), single tile, no masking.
    B, C, H, W = 2, 4, 16, 16
    yp = jax.random.normal(ks[0], (B, C, H, W), dtype=jnp.float32)
    yt = jax.random.randint(ks[1], (B, 1, H, W), 0, C, dtype=jnp.int32)
    loss = jax.block_until_ready(dice_ce_loss(yp, yt, alpha=0.5))
    ref = _reference(yp, yt, alpha=0.5)
    np.testing.assert_allclose(np.asarray(loss), np.asarray(ref),
                               rtol=1e-4, atol=1e-5)

    # Case 2: bf16 logits, multi-tile accumulation, ragged last tile, and the
    # 2-way spatial split used for small batches on v7x (B = 1 -> P = 2).
    B2, C2, H2, W2 = 1, 3, 96, 96
    yp2 = jax.random.normal(ks[2], (B2, C2, H2, W2),
                            dtype=jnp.float32).astype(jnp.bfloat16)
    yt2 = jax.random.randint(ks[3], (B2, 1, H2, W2), 0, C2, dtype=jnp.int32)
    loss2 = jax.block_until_ready(
        dice_ce_loss(yp2, yt2, alpha=0.5, max_rows_per_tile=32))
    ref2 = _reference(yp2, yt2, alpha=0.5)
    np.testing.assert_allclose(np.asarray(loss2), np.asarray(ref2),
                               rtol=1e-3, atol=1e-4)

    # Case 3: H*W not a multiple of 128 -> minimal wrapper pad + in-kernel mask.
    B3, C3, H3, W3 = 2, 5, 12, 12
    yp3 = jax.random.normal(ks[4], (B3, C3, H3, W3), dtype=jnp.float32)
    yt3 = jax.random.randint(ks[5], (B3, 1, H3, W3), 0, C3, dtype=jnp.int32)
    loss3 = jax.block_until_ready(dice_ce_loss(yp3, yt3, alpha=0.5))
    ref3 = _reference(yp3, yt3, alpha=0.5)
    np.testing.assert_allclose(np.asarray(loss3), np.asarray(ref3),
                               rtol=1e-4, atol=1e-5)

    print("KERNEL_OK")
</pallas_src>

<mosaic_0001>
module attributes {stable_mosaic.version = 11 : i64} {
  func.func @_dice_ce_kernel(%arg0: i32, %arg1: i32, %arg2: i32, %arg3: memref<1x4x2x128xf32, #tpu.memory_space<vmem>>, %arg4: memref<1x1x2x128xi8, #tpu.memory_space<vmem>>, %arg5: memref<1x1x4x1xf32, #tpu.memory_space<vmem>>, %arg6: memref<1x1x4x1xf32, #tpu.memory_space<vmem>>, %arg7: memref<1x1x1x1xf32, #tpu.memory_space<vmem>>) attributes {dimension_semantics = [#tpu.dimension_semantics<parallel>, #tpu.dimension_semantics<parallel>, #tpu.dimension_semantics<arbitrary>], iteration_bounds = array<i64: 2, 1, 1>, scalar_prefetch = 0 : i64, scratch_operands = 0 : i64, tpu.core_type = #tpu.core_type<tc>, window_params = [{transform_indices = @transform_0, window_bounds = array<i64: 1, 4, 2, 128>}, {transform_indices = @transform_1, window_bounds = array<i64: 1, 1, 2, 128>}, {transform_indices = @transform_2, window_bounds = array<i64: 1, 1, 4, 1>}, {transform_indices = @transform_3, window_bounds = array<i64: 1, 1, 4, 1>}, {transform_indices = @transform_4, window_bounds = array<i64: 1, 1, 1, 1>}]} {
    %c0_i32 = arith.constant 0 : i32
    %0 = arith.cmpi eq, %arg2, %c0_i32 : i32
    %1 = arith.extui %0 : i1 to i32
    %c0_i32_0 = arith.constant 0 : i32
    %2 = arith.cmpi ne, %1, %c0_i32_0 : i32
    scf.if %2 {
      %cst_45 = arith.constant 0.000000e+00 : f32
      %111 = vector.broadcast %cst_45 : f32 to vector<1x1x4x1xf32>
      %c0_46 = arith.constant 0 : index
      %c0_47 = arith.constant 0 : index
      %c0_48 = arith.constant 0 : index
      %c0_49 = arith.constant 0 : index
      %112 = vector.load %arg5[%c0_46, %c0_47, %c0_48, %c0_49] : memref<1x1x4x1xf32, #tpu.memory_space<vmem>>, vector<1x1x4x1xf32>
      tpu.vector_store %arg5[%c0_46, %c0_47, %c0_48, %c0_49], %111 {strides = array<i32>} : memref<1x1x4x1xf32, #tpu.memory_space<vmem>>, vector<1x1x4x1xf32>,
      %cst_50 = arith.constant 0.000000e+00 : f32
      %113 = vector.broadcast %cst_50 : f32 to vector<1x1x4x1xf32>
      %c0_51 = arith.constant 0 : index
      %c0_52 = arith.constant 0 : index
      %c0_53 = arith.constant 0 : index
      %c0_54 = arith.constant 0 : index
      %114 = vector.load %arg6[%c0_51, %c0_52, %c0_53, %c0_54] : memref<1x1x4x1xf32, #tpu.memory_space<vmem>>, vector<1x1x4x1xf32>
      tpu.vector_store %arg6[%c0_51, %c0_52, %c0_53, %c0_54], %113 {strides = array<i32>} : memref<1x1x4x1xf32, #tpu.memory_space<vmem>>, vector<1x1x4x1xf32>,
      %cst_55 = arith.constant 0.000000e+00 : f32
      %115 = vector.broadcast %cst_55 : f32 to vector<1x1x1x1xf32>
      %c0_56 = arith.constant 0 : index
      %c0_57 = arith.constant 0 : index
      %c0_58 = arith.constant 0 : index
      %c0_59 = arith.constant 0 : index
      %116 = vector.load %arg7[%c0_56, %c0_57, %c0_58, %c0_59] : memref<1x1x1x1xf32, #tpu.memory_space<vmem>>, vector<1x1x1x1xf32>
      tpu.vector_store %arg7[%c0_56, %c0_57, %c0_58, %c0_59], %115 {strides = array<i32>} : memref<1x1x1x1xf32, #tpu.memory_space<vmem>>, vector<1x1x1x1xf32>,
    } else {
    }
    %c0 = arith.constant 0 : index
    %c0_1 = arith.constant 0 : index
    %c0_2 = arith.constant 0 : index
    %c0_3 = arith.constant 0 : index
    %3 = vector.load %arg3[%c0, %c0_1, %c0_2, %c0_3] : memref<1x4x2x128xf32, #tpu.memory_space<vmem>>, vector<1x4x2x128xf32>
    %4 = vector.shape_cast %3 : vector<1x4x2x128xf32> to vector<4x2x128xf32>
    %c0_4 = arith.constant 0 : index
    %c0_5 = arith.constant 0 : index
    %c0_6 = arith.constant 0 : index
    %c0_7 = arith.constant 0 : index
    %5 = vector.load %arg4[%c0_4, %c0_5, %c0_6, %c0_7] : memref<1x1x2x128xi8, #tpu.memory_space<vmem>>, vector<1x1x2x128xi8>
    %6 = vector.shape_cast %5 : vector<1x1x2x128xi8> to vector<2x128xi8>
    %7 = arith.extsi %6 : vector<2x128xi8> to vector<2x128xi32>
    %8 = vector.extract_strided_slice %4 {offsets = [0, 0, 0], sizes = [1, 2, 128], strides = [1, 1, 1]} : vector<4x2x128xf32> to vector<1x2x128xf32>
    %9 = vector.shape_cast %8 : vector<1x2x128xf32> to vector<2x128xf32>
    %10 = vector.extract_strided_slice %4 {offsets = [1, 0, 0], sizes = [1, 2, 128], strides = [1, 1, 1]} : vector<4x2x128xf32> to vector<1x2x128xf32>
    %11 = vector.shape_cast %10 : vector<1x2x128xf32> to vector<2x128xf32>
    %12 = arith.maximumf %9, %11 : vector<2x128xf32>
    %13 = vector.extract_strided_slice %4 {offsets = [2, 0, 0], sizes = [1, 2, 128], strides = [1, 1, 1]} : vector<4x2x128xf32> to vector<1x2x128xf32>
    %14 = vector.shape_cast %13 : vector<1x2x128xf32> to vector<2x128xf32>
    %15 = arith.maximumf %12, %14 : vector<2x128xf32>
    %16 = vector.extract_strided_slice %4 {offsets = [3, 0, 0], sizes = [1, 2, 128], strides = [1, 1, 1]} : vector<4x2x128xf32> to vector<1x2x128xf32>
    %17 = vector.shape_cast %16 : vector<1x2x128xf32> to vector<2x128xf32>
    %18 = arith.maximumf %15, %17 : vector<2x128xf32>
    %19 = vector.shape_cast %18 : vector<2x128xf32> to vector<1x2x128xf32>
    %20 = vector.broadcast %19 : vector<1x2x128xf32> to vector<4x2x128xf32>
    %21 = arith.subf %4, %20 : vector<4x2x128xf32>
    %22 = math.exp %21 : vector<4x2x128xf32>
    %23 = vector.extract_strided_slice %22 {offsets = [0, 0, 0], sizes = [1, 2, 128], strides = [1, 1, 1]} : vector<4x2x128xf32> to vector<1x2x128xf32>
    %24 = vector.shape_cast %23 : vector<1x2x128xf32> to vector<2x128xf32>
    %25 = vector.extract_strided_slice %22 {offsets = [1, 0, 0], sizes = [1, 2, 128], strides = [1, 1, 1]} : vector<4x2x128xf32> to vector<1x2x128xf32>
    %26 = vector.shape_cast %25 : vector<1x2x128xf32> to vector<2x128xf32>
    %27 = arith.addf %24, %26 : vector<2x128xf32>
    %28 = vector.extract_strided_slice %22 {offsets = [2, 0, 0], sizes = [1, 2, 128], strides = [1, 1, 1]} : vector<4x2x128xf32> to vector<1x2x128xf32>
    %29 = vector.shape_cast %28 : vector<1x2x128xf32> to vector<2x128xf32>
    %30 = arith.addf %27, %29 : vector<2x128xf32>
    %31 = vector.extract_strided_slice %22 {offsets = [3, 0, 0], sizes = [1, 2, 128], strides = [1, 1, 1]} : vector<4x2x128xf32> to vector<1x2x128xf32>
    %32 = vector.shape_cast %31 : vector<1x2x128xf32> to vector<2x128xf32>
    %33 = arith.addf %30, %32 : vector<2x128xf32>
    %34 = tpu.reciprocal %33 {approx = true} : vector<2x128xf32> -> vector<2x128xf32>
    %35 = arith.mulf %33, %34 : vector<2x128xf32>
    %cst = arith.constant 2.000000e+00 : f32
    %36 = vector.broadcast %cst : f32 to vector<2x128xf32>
    %37 = arith.subf %36, %35 : vector<2x128xf32>
    %38 = arith.mulf %34, %37 : vector<2x128xf32>
    %39 = vector.shape_cast %38 : vector<2x128xf32> to vector<1x2x128xf32>
    %40 = vector.broadcast %39 : vector<1x2x128xf32> to vector<4x2x128xf32>
    %41 = arith.mulf %22, %40 : vector<4x2x128xf32>
    %42 = math.log %33 : vector<2x128xf32>
    %43 = tpu.iota {dimensions = array<i32: 0>} : vector<4x2x128xi32>
    %44 = vector.shape_cast %7 : vector<2x128xi32> to vector<1x2x128xi32>
    %45 = vector.broadcast %44 : vector<1x2x128xi32> to vector<4x2x128xi32>
    %46 = arith.cmpi eq, %43, %45 : vector<4x2x128xi32>
    %cst_8 = arith.constant 0.000000e+00 : f32
    %47 = vector.broadcast %cst_8 : f32 to vector<4x2x128xf32>
    %48 = arith.select %46, %41, %47 : vector<4x2x128xi1>, vector<4x2x128xf32>
    %cst_9 = arith.constant dense<0.000000e+00> : vector<4x2xf32>
    %49 = vector.multi_reduction <add>, %48, %cst_9 [2] : vector<4x2x128xf32> to vector<4x2xf32>
    %cst_10 = arith.constant 1.000000e+00 : f32
    %cst_11 = arith.constant 0.000000e+00 : f32
    %50 = vector.broadcast %cst_10 : f32 to vector<4x2x128xf32>
    %51 = vector.broadcast %cst_11 : f32 to vector<4x2x128xf32>
    %52 = arith.select %46, %50, %51 : vector<4x2x128xi1>, vector<4x2x128xf32>
    %cst_12 = arith.constant dense<0.000000e+00> : vector<4x2xf32>
    %53 = vector.multi_reduction <add>, %52, %cst_12 [2] : vector<4x2x128xf32> to vector<4x2xf32>
    %cst_13 = arith.constant dense<0.000000e+00> : vector<4x2xf32>
    %54 = vector.multi_reduction <add>, %41, %cst_13 [2] : vector<4x2x128xf32> to vector<4x2xf32>
    %c0_14 = arith.constant 0 : index
    %c0_15 = arith.constant 0 : index
    %c0_16 = arith.constant 0 : index
    %c0_17 = arith.constant 0 : index
    %55 = vector.load %arg5[%c0_14, %c0_15, %c0_16, %c0_17] : memref<1x1x4x1xf32, #tpu.memory_space<vmem>>, vector<1x1x4x1xf32>
    %56 = vector.shape_cast %55 : vector<1x1x4x1xf32> to vector<4x1xf32>
    %cst_18 = arith.constant dense<0.000000e+00> : vector<4xf32>
    %57 = vector.multi_reduction <add>, %49, %cst_18 [1] : vector<4x2xf32> to vector<4xf32>
    %58 = vector.shape_cast %57 : vector<4xf32> to vector<4x1xf32>
    %59 = arith.addf %56, %58 : vector<4x1xf32>
    %c0_19 = arith.constant 0 : index
    %c0_20 = arith.constant 0 : index
    %c0_21 = arith.constant 0 : index
    %c0_22 = arith.constant 0 : index
    %60 = vector.load %arg5[%c0_19, %c0_20, %c0_21, %c0_22] : memref<1x1x4x1xf32, #tpu.memory_space<vmem>>, vector<1x1x4x1xf32>
    %61 = vector.shape_cast %60 : vector<1x1x4x1xf32> to vector<4x1xf32>
    %62 = vector.shape_cast %59 : vector<4x1xf32> to vector<1x1x4x1xf32>
    tpu.vector_store %arg5[%c0_19, %c0_20, %c0_21, %c0_22], %62 {strides = array<i32>} : memref<1x1x4x1xf32, #tpu.memory_space<vmem>>, vector<1x1x4x1xf32>,
    %c0_23 = arith.constant 0 : index
    %c0_24 = arith.constant 0 : index
    %c0_25 = arith.constant 0 : index
    %c0_26 = arith.constant 0 : index
    %63 = vector.load %arg6[%c0_23, %c0_24, %c0_25, %c0_26] : memref<1x1x4x1xf32, #tpu.memory_space<vmem>>, vector<1x1x4x1xf32>
    %64 = vector.shape_cast %63 : vector<1x1x4x1xf32> to vector<4x1xf32>
    %65 = arith.addf %54, %53 : vector<4x2xf32>
    %cst_27 = arith.constant dense<0.000000e+00> : vector<4xf32>
    %66 = vector.multi_reduction <add>, %65, %cst_27 [1] : vector<4x2xf32> to vector<4xf32>
    %67 = vector.shape_cast %66 : vector<4xf32> to vector<4x1xf32>
    %68 = arith.addf %64, %67 : vector<4x1xf32>
    %c0_28 = arith.constant 0 : index
    %c0_29 = arith.constant 0 : index
    %c0_30 = arith.constant 0 : index
    %c0_31 = arith.constant 0 : index
    %69 = vector.load %arg6[%c0_28, %c0_29, %c0_30, %c0_31] : memref<1x1x4x1xf32, #tpu.memory_space<vmem>>, vector<1x1x4x1xf32>
    %70 = vector.shape_cast %69 : vector<1x1x4x1xf32> to vector<4x1xf32>
    %71 = vector.shape_cast %68 : vector<4x1xf32> to vector<1x1x4x1xf32>
    tpu.vector_store %arg6[%c0_28, %c0_29, %c0_30, %c0_31], %71 {strides = array<i32>} : memref<1x1x4x1xf32, #tpu.memory_space<vmem>>, vector<1x1x4x1xf32>,
    %72 = vector.extract_strided_slice %46 {offsets = [0, 0, 0], sizes = [1, 2, 128], strides = [1, 1, 1]} : vector<4x2x128xi1> to vector<1x2x128xi1>
    %73 = vector.shape_cast %72 : vector<1x2x128xi1> to vector<2x128xi1>
    %74 = vector.extract_strided_slice %21 {offsets = [0, 0, 0], sizes = [1, 2, 128], strides = [1, 1, 1]} : vector<4x2x128xf32> to vector<1x2x128xf32>
    %75 = vector.shape_cast %74 : vector<1x2x128xf32> to vector<2x128xf32>
    %cst_32 = arith.constant 0.000000e+00 : f32
    %76 = vector.broadcast %cst_32 : f32 to vector<2x128xf32>
    %77 = arith.select %73, %75, %76 : vector<2x128xi1>, vector<2x128xf32>
    %78 = vector.extract_strided_slice %46 {offsets = [1, 0, 0], sizes = [1, 2, 128], strides = [1, 1, 1]} : vector<4x2x128xi1> to vector<1x2x128xi1>
    %79 = vector.shape_cast %78 : vector<1x2x128xi1> to vector<2x128xi1>
    %80 = vector.extract_strided_slice %21 {offsets = [1, 0, 0], sizes = [1, 2, 128], strides = [1, 1, 1]} : vector<4x2x128xf32> to vector<1x2x128xf32>
    %81 = vector.shape_cast %80 : vector<1x2x128xf32> to vector<2x128xf32>
    %cst_33 = arith.constant 0.000000e+00 : f32
    %82 = vector.broadcast %cst_33 : f32 to vector<2x128xf32>
    %83 = arith.select %79, %81, %82 : vector<2x128xi1>, vector<2x128xf32>
    %84 = arith.addf %77, %83 : vector<2x128xf32>
    %85 = vector.extract_strided_slice %46 {offsets = [2, 0, 0], sizes = [1, 2, 128], strides = [1, 1, 1]} : vector<4x2x128xi1> to vector<1x2x128xi1>
    %86 = vector.shape_cast %85 : vector<1x2x128xi1> to vector<2x128xi1>
    %87 = vector.extract_strided_slice %21 {offsets = [2, 0, 0], sizes = [1, 2, 128], strides = [1, 1, 1]} : vector<4x2x128xf32> to vector<1x2x128xf32>
    %88 = vector.shape_cast %87 : vector<1x2x128xf32> to vector<2x128xf32>
    %cst_34 = arith.constant 0.000000e+00 : f32
    %89 = vector.broadcast %cst_34 : f32 to vector<2x128xf32>
    %90 = arith.select %86, %88, %89 : vector<2x128xi1>, vector<2x128xf32>
    %91 = arith.addf %84, %90 : vector<2x128xf32>
    %92 = vector.extract_strided_slice %46 {offsets = [3, 0, 0], sizes = [1, 2, 128], strides = [1, 1, 1]} : vector<4x2x128xi1> to vector<1x2x128xi1>
    %93 = vector.shape_cast %92 : vector<1x2x128xi1> to vector<2x128xi1>
    %94 = vector.extract_strided_slice %21 {offsets = [3, 0, 0], sizes = [1, 2, 128], strides = [1, 1, 1]} : vector<4x2x128xf32> to vector<1x2x128xf32>
    %95 = vector.shape_cast %94 : vector<1x2x128xf32> to vector<2x128xf32>
    %cst_35 = arith.constant 0.000000e+00 : f32
    %96 = vector.broadcast %cst_35 : f32 to vector<2x128xf32>
    %97 = arith.select %93, %95, %96 : vector<2x128xi1>, vector<2x128xf32>
    %98 = arith.addf %91, %97 : vector<2x128xf32>
    %c0_36 = arith.constant 0 : index
    %c0_37 = arith.constant 0 : index
    %c0_38 = arith.constant 0 : index
    %c0_39 = arith.constant 0 : index
    %99 = vector.load %arg7[%c0_36, %c0_37, %c0_38, %c0_39] : memref<1x1x1x1xf32, #tpu.memory_space<vmem>>, vector<1x1x1x1xf32>
    %100 = vector.shape_cast %99 : vector<1x1x1x1xf32> to vector<1x1xf32>
    %101 = arith.subf %42, %98 : vector<2x128xf32>
    %102 = vector.shape_cast %101 : vector<2x128xf32> to vector<1x2x128xf32>
    %cst_40 = arith.constant dense<0.000000e+00> : vector<1xf32>
    %103 = vector.multi_reduction <add>, %102, %cst_40 [1, 2] : vector<1x2x128xf32> to vector<1xf32>
    %104 = vector.shape_cast %103 : vector<1xf32> to vector<1x1x1xf32>
    %105 = vector.extract %104[0, 0, 0] : f32 from vector<1x1x1xf32>
    %106 = vector.broadcast %105 : f32 to vector<1x1xf32>
    %107 = arith.addf %100, %106 : vector<1x1xf32>
    %c0_41 = arith.constant 0 : index
    %c0_42 = arith.constant 0 : index
    %c0_43 = arith.constant 0 : index
    %c0_44 = arith.constant 0 : index
    %108 = vector.load %arg7[%c0_41, %c0_42, %c0_43, %c0_44] : memref<1x1x1x1xf32, #tpu.memory_space<vmem>>, vector<1x1x1x1xf32>
    %109 = vector.shape_cast %108 : vector<1x1x1x1xf32> to vector<1x1xf32>
    %110 = vector.shape_cast %107 : vector<1x1xf32> to vector<1x1x1x1xf32>
    tpu.vector_store %arg7[%c0_41, %c0_42, %c0_43, %c0_44], %110 {strides = array<i32>} : memref<1x1x1x1xf32, #tpu.memory_space<vmem>>, vector<1x1x1x1xf32>,
    return
  }
  func.func @transform_0(%arg0: i32, %arg1: i32, %arg2: i32) -> (i32, i32, i32, i32) {
    %c1_i32 = arith.constant 1 : i32
    %0 = arith.muli %arg1, %c1_i32 : i32
    %1 = arith.addi %0, %arg2 : i32
    %c0_i32 = arith.constant 0 : i32
    %2 = arith.minsi %1, %c0_i32 : i32
    %c0_i32_0 = arith.constant 0 : i32
    %c0_i32_1 = arith.constant 0 : i32
    %c0_i32_2 = arith.constant 0 : i32
    return %arg0, %c0_i32_0, %2, %c0_i32_1 : i32, i32, i32, i32
  }
  func.func @transform_1(%arg0: i32, %arg1: i32, %arg2: i32) -> (i32, i32, i32, i32) {
    %c1_i32 = arith.constant 1 : i32
    %0 = arith.muli %arg1, %c1_i32 : i32
    %1 = arith.addi %0, %arg2 : i32
    %c0_i32 = arith.constant 0 : i32
    %2 = arith.minsi %1, %c0_i32 : i32
    %c0_i32_0 = arith.constant 0 : i32
    %c0_i32_1 = arith.constant 0 : i32
    %c0_i32_2 = arith.constant 0 : i32
    return %arg0, %c0_i32_0, %2, %c0_i32_1 : i32, i32, i32, i32
  }
  func.func @transform_2(%arg0: i32, %arg1: i32, %arg2: i32) -> (i32, i32, i32, i32) {
    %c0_i32 = arith.constant 0 : i32
    %c0_i32_0 = arith.constant 0 : i32
    %c0_i32_1 = arith.constant 0 : i32
    return %arg0, %arg1, %c0_i32, %c0_i32_0 : i32, i32, i32, i32
  }
  func.func @transform_3(%arg0: i32, %arg1: i32, %arg2: i32) -> (i32, i32, i32, i32) {
    %c0_i32 = arith.constant 0 : i32
    %c0_i32_0 = arith.constant 0 : i32
    %c0_i32_1 = arith.constant 0 : i32
    return %arg0, %arg1, %c0_i32, %c0_i32_0 : i32, i32, i32, i32
  }
  func.func @transform_4(%arg0: i32, %arg1: i32, %arg2: i32) -> (i32, i32, i32, i32) {
    %c0_i32 = arith.constant 0 : i32
    %c0_i32_0 = arith.constant 0 : i32
    %c0_i32_1 = arith.constant 0 : i32
    return %arg0, %arg1, %c0_i32, %c0_i32_0 : i32, i32, i32, i32
  }
}

</mosaic_0001>

<llo_original>
// kernel: tpu_custom_call.1
$region0: #{tpu_custom_call.1}
  #allocation0 [shape = 'u32[]', space=smem, size = 0x4, offset = 0x4, fixed_abs, tag = 'smem constant byte address 0x4 - core index']
  #allocation1 [shape = 'u32[144,128]{1,0:T(1,128)}', space=vmem, size = 0x12000, scoped, tag = 'internal scratch']
  %s0 = inlined_call_operand.hbm [shape: f32[2,4,2,128], index: 0, kind: input, shape index: {}]
  %s1 = inlined_call_operand.hbm [shape: s8[2,1,2,128], index: 1, kind: input, shape index: {}]
  %s2 = inlined_call_operand.vmem [shape: f32[2,1,4,1], index: 2, kind: output, shape index: {0}]
  %s3 = inlined_call_operand.vmem [shape: f32[2,1,4,1], index: 3, kind: output, shape index: {1}]
  %s4 = inlined_call_operand.vmem [shape: f32[2,1,1,1], index: 4, kind: output, shape index: {2}]
  %5 = xla_tuple %s2, %s3, %s4
  %s6 = sld [smem:[#allocation0]]
  $region69: #{tpu_custom_call.1} parent=0
    _
  %s8 = ssub.s32 1, %s6
  %s9 = scalar_select 0, %s8, %s6
  $region1: #{tpu_custom_call.1} parent=0
    #allocation2 [shape = 'u8[8192]{0}', space=vmem, size = 0x2000, scoped, tag = 'input window, operand 0']
    #allocation3 [shape = 's32[2]{0}', space=sflag, size = 0x8, scoped, tag = 'scoped memory for tpu_custom_call.1']
    #allocation4 [shape = 'u8[1024]{0}', space=vmem, size = 0x400, scoped, tag = 'input window, operand 1']
    #allocation5 [shape = 's32[2]{0}', space=sflag, size = 0x8, scoped, tag = 'scoped memory for tpu_custom_call.1']
    %10 = vsyncpa [#allocation3], 0
    %s11 = scalar_lea.sflag [#allocation3], 1
    %12 = vsyncpa %s11, 0
    %13 = vsyncpa [#allocation5], 0
    %s14 = scalar_lea.sflag [#allocation5], 1
    %15 = vsyncpa %s14, 0
    loop: start=0, step=1, limit=4
    $region2: #{tpu_custom_call.1} parent=1 // loop_pre_header
      _
    $region3: #{tpu_custom_call.1} parent=1 // loop_header
      %s17 = sphi 0, %s21
      %p18 = scmp.ge.s32.totalorder %s17, 4
      %s24 = sphi 0, %s43
      %s25 = sphi 0, %s39
      %s26 = sphi 0, %s35
      %s27 = sphi 0, %s24
      %s28 = sphi 0, %s25
      %s29 = sphi 0, %s26
      %s30 = sphi 0, %s27
      %s31 = sphi 0, %s28
      %s32 = sphi 0, %s29
      %s54 = sphi 0, %s56
      %s57 = sphi 0, %s54
      %s58 = sphi 0, %s57
      %s74 = sphi 0, %s58
      %s88 = sphi 0, %s90
      %s91 = sphi 0, %s88
      %s92 = sphi 0, %s91
      %s108 = sphi 0, %s92
      %s116 = sphi 0, %s118
      %s119 = sphi 0, %s116
      %s120 = sphi 0, %s119
      %s136 = sphi 0, %s120
      %s144 = sphi 0, %s146
      %s147 = sphi 0, %s144
      %s148 = sphi 0, %s147
      %s164 = sphi 0, %s148
      %s172 = sphi 0, %s174
      %s175 = sphi 0, %s172
      %s176 = sphi 0, %s175
      %s192 = sphi 0, %s176
    $region4: #{tpu_custom_call.1} parent=1 // loop_header_branch
      %20 = sbr.rel (%p18) target = $region8
    $region5: #{tpu_custom_call.1} parent=1 // loop_body
      %s22 = ssub.s32 %s17, 1
      %s23 = ssub.s32 %s17, 2
      %s33 = sadd.s32 1, %s26
      %p34 = scmp.ge.s32.totalorder %s33, 1
      %s35 = scalar_select %p34, 0, %s33
      %s36 = sadd.s32 1, %s25
      %s37 = scalar_select %p34, %s36, %s25
      %p38 = scmp.ge.s32.totalorder %s37, 1
      %s39 = scalar_select %p38, 0, %s37
      %s40 = sadd.s32 1, %s24
      %s41 = scalar_select %p38, %s40, %s24
      %p42 = scmp.ge.s32.totalorder %s41, 2
      %s43 = scalar_select %p42, 0, %s41
      %s44 = sadd.s32 %s25, %s26
      %p45 = scmp.lt.s32.totalorder %s44, 0
      %s46 = scalar_select %p45, %s44, 0
      %s47 = sadd.s32 %s39, %s35
      %p48 = scmp.lt.s32.totalorder %s47, 0
      %s49 = scalar_select %p48, %s47, 0
      %s50 = ssub.s32 %s24, %s43
      %s51 = ssub.s32 %s46, %s49
      %s52 = sor.u32 %s50, %s51
      %p53 = scmp.eq.s32.totalorder %s52, 0
      %s55 = sadd.s32 %s54, 1
      %s56 = scalar_select %p53, %s54, %s55
      %p59 = pneg %p53
      %p60 = scmp.eq.s32.totalorder %s17, 1
      %p61 = por %p59, %p60
      %p62 = scmp.ne.s32.totalorder %s54, %s57
      %p63 = scmp.eq.s32.totalorder %s17, 0
      %p64 = por %p62, %p63
      %p65 = scmp.ne.s32.totalorder %s54, %s57
      %p66 = scmp.eq.s32.totalorder %s22, 1
      %p67 = por %p65, %p66
      %p68 = scmp.ne.s32.totalorder %s57, %s58
      %p69 = scmp.eq.s32.totalorder %s22, 0
      %p70 = por %p68, %p69
      %p71 = scmp.ne.s32.totalorder %s57, %s58
      %p72 = scmp.eq.s32.totalorder %s23, 1
      %p73 = por %p71, %p72
      %p75 = scmp.ne.s32.totalorder %s58, %s74
      %p76 = scmp.eq.s32.totalorder %s23, 0
      %p77 = por %p75, %p76
      %s78 = sadd.s32 %s25, %s26
      %p79 = scmp.lt.s32.totalorder %s78, 0
      %s80 = scalar_select %p79, %s78, 0
      %s81 = sadd.s32 %s39, %s35
      %p82 = scmp.lt.s32.totalorder %s81, 0
      %s83 = scalar_select %p82, %s81, 0
      %s84 = ssub.s32 %s24, %s43
      %s85 = ssub.s32 %s80, %s83
      %s86 = sor.u32 %s84, %s85
      %p87 = scmp.eq.s32.totalorder %s86, 0
      %s89 = sadd.s32 %s88, 1
      %s90 = scalar_select %p87, %s88, %s89
      %p93 = pneg %p87
      %p94 = scmp.eq.s32.totalorder %s17, 1
      %p95 = por %p93, %p94
      %p96 = scmp.ne.s32.totalorder %s88, %s91
      %p97 = scmp.eq.s32.totalorder %s17, 0
      %p98 = por %p96, %p97
      %p99 = scmp.ne.s32.totalorder %s88, %s91
      %p100 = scmp.eq.s32.totalorder %s22, 1
      %p101 = por %p99, %p100
      %p102 = scmp.ne.s32.totalorder %s91, %s92
      %p103 = scmp.eq.s32.totalorder %s22, 0
      %p104 = por %p102, %p103
      %p105 = scmp.ne.s32.totalorder %s91, %s92
      %p106 = scmp.eq.s32.totalorder %s23, 1
      %p107 = por %p105, %p106
      %p109 = scmp.ne.s32.totalorder %s92, %s108
      %p110 = scmp.eq.s32.totalorder %s23, 0
      %p111 = por %p109, %p110
      %s112 = ssub.s32 %s24, %s43
      %s113 = ssub.s32 %s25, %s39
      %s114 = sor.u32 %s112, %s113
      %p115 = scmp.eq.s32.totalorder %s114, 0
      %s117 = sadd.s32 %s116, 1
      %s118 = scalar_select %p115, %s116, %s117
      %p121 = pneg %p115
      %p122 = scmp.eq.s32.totalorder %s17, 1
      %p123 = por %p121, %p122
      %p124 = scmp.ne.s32.totalorder %s116, %s119
      %p125 = scmp.eq.s32.totalorder %s17, 0
      %p126 = por %p124, %p125
      %p127 = scmp.ne.s32.totalorder %s116, %s119
      %p128 = scmp.eq.s32.totalorder %s22, 1
      %p129 = por %p127, %p128
      %p130 = scmp.ne.s32.totalorder %s119, %s120
      %p131 = scmp.eq.s32.totalorder %s22, 0
      %p132 = por %p130, %p131
      %p133 = scmp.ne.s32.totalorder %s119, %s120
      %p134 = scmp.eq.s32.totalorder %s23, 1
      %p135 = por %p133, %p134
      %p137 = scmp.ne.s32.totalorder %s120, %s136
      %p138 = scmp.eq.s32.totalorder %s23, 0
      %p139 = por %p137, %p138
      %s140 = ssub.s32 %s24, %s43
      %s141 = ssub.s32 %s25, %s39
      %s142 = sor.u32 %s140, %s141
      %p143 = scmp.eq.s32.totalorder %s142, 0
      %s145 = sadd.s32 %s144, 1
      %s146 = scalar_select %p143, %s144, %s145
      %p149 = pneg %p143
      %p150 = scmp.eq.s32.totalorder %s17, 1
      %p151 = por %p149, %p150
      %p152 = scmp.ne.s32.totalorder %s144, %s147
      %p153 = scmp.eq.s32.totalorder %s17, 0
      %p154 = por %p152, %p153
      %p155 = scmp.ne.s32.totalorder %s144, %s147
      %p156 = scmp.eq.s32.totalorder %s22, 1
      %p157 = por %p155, %p156
      %p158 = scmp.ne.s32.totalorder %s147, %s148
      %p159 = scmp.eq.s32.totalorder %s22, 0
      %p160 = por %p158, %p159
      %p161 = scmp.ne.s32.totalorder %s147, %s148
      %p162 = scmp.eq.s32.totalorder %s23, 1
      %p163 = por %p161, %p162
      %p165 = scmp.ne.s32.totalorder %s148, %s164
      %p166 = scmp.eq.s32.totalorder %s23, 0
      %p167 = por %p165, %p166
      %s168 = ssub.s32 %s24, %s43
      %s169 = ssub.s32 %s25, %s39
      %s170 = sor.u32 %s168, %s169
      %p171 = scmp.eq.s32.totalorder %s170, 0
      %s173 = sadd.s32 %s172, 1
      %s174 = scalar_select %p171, %s172, %s173
      %p177 = pneg %p171
      %p178 = scmp.eq.s32.totalorder %s17, 1
      %p179 = por %p177, %p178
      %p180 = scmp.ne.s32.totalorder %s172, %s175
      %p181 = scmp.eq.s32.totalorder %s17, 0
      %p182 = por %p180, %p181
      %p183 = scmp.ne.s32.totalorder %s172, %s175
      %p184 = scmp.eq.s32.totalorder %s22, 1
      %p185 = por %p183, %p184
      %p186 = scmp.ne.s32.totalorder %s175, %s176
      %p187 = scmp.eq.s32.totalorder %s22, 0
      %p188 = por %p186, %p187
      %p189 = scmp.ne.s32.totalorder %s175, %s176
      %p190 = scmp.eq.s32.totalorder %s23, 1
      %p191 = por %p189, %p190
      %p193 = scmp.ne.s32.totalorder %s176, %s192
      %p194 = scmp.eq.s32.totalorder %s23, 0
      %p195 = por %p193, %p194
      %p196 = scmp.le.s32.totalorder 1, %s17
      %p197 = scmp.lt.s32.totalorder %s17, 3
      %p198 = pnand %p196, %p197
      %p199 = pneg %p198
      // Predicated region
      $region9: #{tpu_custom_call.1} parent=5 // pred_check
        _
      $region10: #{tpu_custom_call.1} parent=5 // pred_check_branch
        %201 = sbr.rel (%p198) target = $region12
      $region11: #{tpu_custom_call.1} parent=5 // pred_region
        %s202 = ssub.s32 %s17, 1
      $region12: #{tpu_custom_call.1} parent=5 // pred_fallthru
        _
      %p203 = scmp.lt.s32.totalorder %s17, 2
      // Predicated region
      $region13: #{tpu_custom_call.1} parent=5 // pred_check
        %p204 = pneg %p203
      $region14: #{tpu_custom_call.1} parent=5 // pred_check_branch
        %206 = sbr.rel (%p204) target = $region16
      $region15: #{tpu_custom_call.1} parent=5 // pred_region
        // Predicated region
        $region17: #{tpu_custom_call.1} parent=15 // pred_check
          %p207 = pneg %p64
        $region18: #{tpu_custom_call.1} parent=15 // pred_check_branch
          %209 = sbr.rel (%p207) target = $region20
        $region19: #{tpu_custom_call.1} parent=15 // pred_region
          %s210 = sand.u32 %s54, 1
          %s211 = scalar_lea.sflag [#allocation3], %s210
          %s212 = sand.u32 %s54, 1
          %s213 = smul.addr %s212, 8
          %s214 = scalar_lea.vmem [#allocation2], %s213
          %s215 = sadd.s32 %s25, %s26
          %p216 = scmp.lt.s32.totalorder %s215, 0
          %s217 = scalar_select %p216, %s215, 0
          %s219 = ssub.s32 128, 128
          %220 = vsyncadd %s211, %s219
          %s221 = smul.addr %s24, 4
          %s222 = sadd.s32 %s217, %s221
          %s223 = smul.addr %s222, 32
          %s224 = scalar_lea.hbm %s0, %s223
          %s225 = sshll.u32 %s214, 4
          %s226 = int_to_ptr.vmem [resolvable:$true] %s225
          %231 = dma.hbm_to_vmem [thread:$0]  %s224, 128, %s226, %s211, 32, 32, 2
        $region20: #{tpu_custom_call.1} parent=15 // pred_fallthru
          _
        // Predicated region
        $region21: #{tpu_custom_call.1} parent=15 // pred_check
          %p232 = pneg %p98
        $region22: #{tpu_custom_call.1} parent=15 // pred_check_branch
          %234 = sbr.rel (%p232) target = $region24
        $region23: #{tpu_custom_call.1} parent=15 // pred_region
          %s235 = sand.u32 %s88, 1
          %s236 = scalar_lea.sflag [#allocation5], %s235
          %s237 = sand.u32 %s88, 1
          %s238 = scalar_lea.vmem [#allocation4], %s237
          %s239 = sadd.s32 %s25, %s26
          %p240 = scmp.lt.s32.totalorder %s239, 0
          %s241 = scalar_select %p240, %s239, 0
          %s243 = ssub.s32 16, 16
          %244 = vsyncadd %s236, %s243
          %s245 = sadd.s32 %s241, %s24
          %s246 = smul.addr %s245, 16
          %s247 = scalar_lea.hbm %s1, %s246
          %s249 = sshll.u32 %s238, 4
          %s250 = int_to_ptr.vmem [resolvable:$true] %s249
          %252 = dma.hbm_to_vmem [thread:$0]  %s247, 16, %s250, %s236
        $region24: #{tpu_custom_call.1} parent=15 // pred_fallthru
          _
      $region16: #{tpu_custom_call.1} parent=5 // pred_fallthru
        _
      %p253 = scmp.le.s32.totalorder 1, %s17
      %p254 = scmp.lt.s32.totalorder %s17, 3
      %p255 = pnand %p253, %p254
      %p256 = pneg %p255
      // Predicated region
      $region25: #{tpu_custom_call.1} parent=5 // pred_check
        _
      $region26: #{tpu_custom_call.1} parent=5 // pred_check_branch
        %258 = sbr.rel (%p255) target = $region28
      $region27: #{tpu_custom_call.1} parent=5 // pred_region
        %s259 = ssub.s32 %s17, 1
        %s260 = sand.u32 %s57, 1
        %s261 = scalar_lea.sflag [#allocation3], %s260
        %s262 = sand.u32 %s57, 1
        %s263 = smul.addr %s262, 8
        %s264 = scalar_lea.vmem [#allocation2], %s263
        // Predicated region
        $region29: #{tpu_custom_call.1} parent=27 // pred_check
          %p265 = pneg %p70
        $region30: #{tpu_custom_call.1} parent=27 // pred_check_branch
          %267 = sbr.rel (%p265) target = $region32
        $region31: #{tpu_custom_call.1} parent=27 // pred_region
          %268 = dma.done %s261, 128
        $region32: #{tpu_custom_call.1} parent=27 // pred_fallthru
          _
        %s269 = sand.u32 %s91, 1
        %s270 = scalar_lea.sflag [#allocation5], %s269
        %s271 = sand.u32 %s91, 1
        %s272 = scalar_lea.vmem [#allocation4], %s271
        // Predicated region
        $region33: #{tpu_custom_call.1} parent=27 // pred_check
          %p273 = pneg %p104
        $region34: #{tpu_custom_call.1} parent=27 // pred_check_branch
          %275 = sbr.rel (%p273) target = $region36
        $region35: #{tpu_custom_call.1} parent=27 // pred_region
          %276 = dma.done %s270, 16
        $region36: #{tpu_custom_call.1} parent=27 // pred_fallthru
          _
        %s277 = sand.u32 %s57, 1
        %s278 = scalar_lea.sflag [#allocation3], %s277
        %s279 = sand.u32 %s57, 1
        %s280 = smul.addr %s279, 8
        %s281 = scalar_lea.vmem [#allocation2], %s280
        %p282 = pneg %p70
        %p283 = pneg %p67
        %s284 = sand.u32 %s91, 1
        %s285 = scalar_lea.sflag [#allocation5], %s284
        %s286 = sand.u32 %s91, 1
        %s287 = scalar_lea.vmem [#allocation4], %s286
        %p288 = pneg %p104
        %p289 = pneg %p101
        %p290 = pneg %p132
        %p291 = pneg %p129
        %p292 = scmp.lt.s32.totalorder %s27, 1
        %s293 = scalar_select %p292, %s27, 1
        %p294 = scmp.lt.s32.totalorder %s28, 0
        %s295 = scalar_select %p294, %s28, 0
        %s296 = sadd.s32 %s295, %s293
        %s297 = smul.addr %s296, 4
        %s298 = scalar_lea.vmem %s2, %s297
        %p299 = pneg %p160
        %p300 = pneg %p157
        %p301 = scmp.lt.s32.totalorder %s27, 1
        %s302 = scalar_select %p301, %s27, 1
        %p303 = scmp.lt.s32.totalorder %s28, 0
        %s304 = scalar_select %p303, %s28, 0
        %s305 = sadd.s32 %s304, %s302
        %s306 = smul.addr %s305, 4
        %s307 = scalar_lea.vmem %s3, %s306
        %p308 = pneg %p188
        %p309 = pneg %p185
        %p310 = scmp.lt.s32.totalorder %s27, 1
        %s311 = scalar_select %p310, %s27, 1
        %p312 = scmp.lt.s32.totalorder %s28, 0
        %s313 = scalar_select %p312, %s28, 0
        %s314 = sadd.s32 %s313, %s311
        %s315 = scalar_lea.vmem %s4, %s314
        %s316 = sadd.s32 %s28, %s29
        %p317 = scmp.lt.s32.totalorder %s316, 0
        %s318 = scalar_select %p317, %s316, 0
        %s319 = sadd.s32 %s28, %s29
        %p320 = scmp.lt.s32.totalorder %s319, 0
        %s321 = scalar_select %p320, %s319, 0
        %p322 = scmp.lt.s32.totalorder %s27, 1
        %s323 = scalar_select %p322, %s27, 1
        %p324 = scmp.lt.s32.totalorder %s28, 0
        %s325 = scalar_select %p324, %s28, 0
        %s326 = sadd.s32 %s325, %s323
        %s327 = smul.addr %s326, 4
        %s328 = scalar_lea.vmem %s2, %s327
        %p329 = scmp.lt.s32.totalorder %s27, 1
        %s330 = scalar_select %p329, %s27, 1
        %p331 = scmp.lt.s32.totalorder %s28, 0
        %s332 = scalar_select %p331, %s28, 0
        %s333 = sadd.s32 %s332, %s330
        %s334 = smul.addr %s333, 4
        %s335 = scalar_lea.vmem %s3, %s334
        %p336 = scmp.lt.s32.totalorder %s27, 1
        %s337 = scalar_select %p336, %s27, 1
        %p338 = scmp.lt.s32.totalorder %s28, 0
        %s339 = scalar_select %p338, %s28, 0
        %s340 = sadd.s32 %s339, %s337
        %s341 = scalar_lea.vmem %s4, %s340
        %p342 = scmp.eq.s32.totalorder %s29, 0
        // Predicated region
        $region37: #{tpu_custom_call.1} parent=27 // pred_check
          %p343 = pneg %p342
        $region38: #{tpu_custom_call.1} parent=27 // pred_check_branch
          %345 = sbr.rel (%p343) target = $region40
        $region39: #{tpu_custom_call.1} parent=27 // pred_region
          %vm346 = vcmask 3072
          %347 = vst.msk [vmem:[%s328] sm:$0xf] %vm346, 0.0
          %348 = vst.msk [vmem:[%s335] sm:$0xf] %vm346, 0.0
          %vm349 = vcmask 0
          %350 = vst.msk [vmem:[%s341] sm:$0x1] %vm349, 0.0
        $region40: #{tpu_custom_call.1} parent=27 // pred_fallthru
          _
        %v351 = vld [vmem:[%s264] sm:$0x3]
        %v352 = vld [vmem:[%s264 + $0x2] sm:$0x3]
        %v353 = vld [vmem:[%s264 + $0x4] sm:$0x3]
        %v354 = vld [vmem:[%s264 + $0x6] sm:$0x3]
        %v355 = vld [vmem:[%s272] sm:$0x1]
        %v356 = vunpack.c.0.s8 %v355
        %v357 = vmax.f32 %v351, %v352
        %v358 = vmax.f32 %v357, %v353
        %v359 = vmax.f32 %v358, %v354
        %v360 = vsub.f32 %v351, %v359
        %v361 = vsub.f32 %v352, %v359
        %v362 = vsub.f32 %v353, %v359
        %v363 = vsub.f32 %v354, %v359
        %v364 = vmul.f32 %v360, 1.442695
        %v365 = vpow.pop %v364
        %v366 = vmul.f32 %v361, 1.442695
        %v367 = vpow.pop %v366
        %v368 = vmul.f32 %v362, 1.442695
        %v369 = vpow.pop %v368
        %v370 = vmul.f32 %v363, 1.442695
        %v371 = vpow.pop %v370
        %v372 = vadd.f32 %v365, %v367
        %v373 = vadd.f32 %v372, %v369
        %v374 = vadd.f32 %v373, %v371
        %v375 = vrcp.pop %v374
        %v376 = vmul.f32 %v374, %v375
        %v377 = vsub.f32 2.0, %v376
        %v378 = vmul.f32 %v375, %v377
        %v379 = vmul.f32 %v365, %v378
        %v380 = vmul.f32 %v367, %v378
        %v381 = vmul.f32 %v369, %v378
        %v382 = vmul.f32 %v371, %v378
        %v383 = vlog2.pop %v374
        %v384 = vmul.f32 %v383, 0.6931472
        %vm385 = vcmp.eq.s32.totalorder %v356, 0
        %vm386 = vcmp.eq.s32.totalorder %v356, 1
        %vm387 = vcmp.eq.s32.totalorder %v356, 2
        %vm388 = vcmp.eq.s32.totalorder %v356, 3
        %v389 = vsel %vm385, %v379, 0.0
        %v390 = vsel %vm386, %v380, 0.0
        %v391 = vsel %vm387, %v381, 0.0
        %v392 = vsel %vm388, %v382, 0.0
        %vm393 = vcmask 1041408
        %v394 = vsel %vm393, %v389, 0.0
        %395 = vadd.xlane.f32.xlu0 %v394
        %v396 = vpop.xlane.xlu0 %395
        %v397 = vsel %vm393, %v390, 0.0
        %398 = vadd.xlane.f32.xlu0 %v397
        %v399 = vpop.xlane.xlu0 %398
        %v400 = vsel %vm393, %v391, 0.0
        %401 = vadd.xlane.f32.xlu0 %v400
        %v402 = vpop.xlane.xlu0 %401
        %v403 = vsel %vm393, %v392, 0.0
        %404 = vadd.xlane.f32.xlu0 %v403
        %v405 = vpop.xlane.xlu0 %404
        %v406 = vsel %vm385, 1.0, 0.0
        %v407 = vsel %vm386, 1.0, 0.0
        %v408 = vsel %vm387, 1.0, 0.0
        %v409 = vsel %vm388, 1.0, 0.0
        %v410 = vsel %vm393, %v406, 0.0
        %411 = vadd.xlane.f32.xlu0 %v410
        %v412 = vpop.xlane.xlu0 %411
        %v413 = vsel %vm393, %v407, 0.0
        %414 = vadd.xlane.f32.xlu0 %v413
        %v415 = vpop.xlane.xlu0 %414
        %v416 = vsel %vm393, %v408, 0.0
        %417 = vadd.xlane.f32.xlu0 %v416
        %v418 = vpop.xlane.xlu0 %417
        %v419 = vsel %vm393, %v409, 0.0
        %420 = vadd.xlane.f32.xlu0 %v419
        %v421 = vpop.xlane.xlu0 %420
        %v422 = vsel %vm393, %v379, 0.0
        %423 = vadd.xlane.f32.xlu0 %v422
        %v424 = vpop.xlane.xlu0 %423
        %v425 = vsel %vm393, %v380, 0.0
        %426 = vadd.xlane.f32.xlu0 %v425
        %v427 = vpop.xlane.xlu0 %426
        %v428 = vsel %vm393, %v381, 0.0
        %429 = vadd.xlane.f32.xlu0 %v428
        %v430 = vpop.xlane.xlu0 %429
        %v431 = vsel %vm393, %v382, 0.0
        %432 = vadd.xlane.f32.xlu0 %v431
        %v433 = vpop.xlane.xlu0 %432
        %v434 = vld [vmem:[%s328] sm:$0xf]
        %v439 = vlaneseq
        %v440 = vand.u32 %v439, 127
        %v441 = vlaneseq
        %v442 = vshrl.u32 %v441, 7
        %v443 = vsub.s32 %v440, %v442
        %v444 = vrot.slane %v396, %v443
        %v445 = vlaneseq
        %v446 = vshrl.u32 %v445, 7
        %v447 = vsub.s32 %v440, %v446
        %v448 = vrot.slane %v399, %v447
        %v449 = vlaneseq
        %v450 = vshrl.u32 %v449, 7
        %v451 = vsub.s32 %v440, %v450
        %v452 = vrot.slane %v402, %v451
        %v453 = vlaneseq
        %v454 = vshrl.u32 %v453, 7
        %v455 = vsub.s32 %v440, %v454
        %v456 = vrot.slane %v405, %v455
        %vm457 = vcmask 1041409
        %v458 = vsel %vm457, %v448, %v444
        %vm459 = vcmask 1042434
        %v460 = vsel %vm459, %v452, %v458
        %vm461 = vcmask 1043459
        %v462 = vsel %vm461, %v456, %v460
        %vm464 = vcmask 11264
        %v465 = vsel %vm464, %v462, 0.0
        %466 = vadd.xlane.f32.xlu0 %v465
        %v467 = vpop.xlane.xlu0 %466
        %v468 = vadd.f32 %v434, %v467
        %vm469 = vcmask 3072
        %470 = vst.msk [vmem:[%s328] sm:$0xf] %vm469, %v468
        %v471 = vld [vmem:[%s335] sm:$0xf]
        %v472 = vadd.f32 %v424, %v412
        %v473 = vadd.f32 %v427, %v415
        %v474 = vadd.f32 %v430, %v418
        %v475 = vadd.f32 %v433, %v421
        %v480 = vlaneseq
        %v481 = vshrl.u32 %v480, 7
        %v482 = vsub.s32 %v440, %v481
        %v483 = vrot.slane %v472, %v482
        %v484 = vlaneseq
        %v485 = vshrl.u32 %v484, 7
        %v486 = vsub.s32 %v440, %v485
        %v487 = vrot.slane %v473, %v486
        %v488 = vlaneseq
        %v489 = vshrl.u32 %v488, 7
        %v490 = vsub.s32 %v440, %v489
        %v491 = vrot.slane %v474, %v490
        %v492 = vlaneseq
        %v493 = vshrl.u32 %v492, 7
        %v494 = vsub.s32 %v440, %v493
        %v495 = vrot.slane %v475, %v494
        %v496 = vsel %vm457, %v487, %v483
        %v497 = vsel %vm459, %v491, %v496
        %v498 = vsel %vm461, %v495, %v497
        %v500 = vsel %vm464, %v498, 0.0
        %501 = vadd.xlane.f32.xlu0 %v500
        %v502 = vpop.xlane.xlu0 %501
        %v503 = vadd.f32 %v471, %v502
        %504 = vst.msk [vmem:[%s335] sm:$0xf] %vm469, %v503
        %v505 = vsel %vm385, %v360, 0.0
        %v506 = vsel %vm386, %v361, 0.0
        %v507 = vadd.f32 %v505, %v506
        %v508 = vsel %vm387, %v362, 0.0
        %v509 = vadd.f32 %v507, %v508
        %v510 = vsel %vm388, %v363, 0.0
        %v511 = vadd.f32 %v509, %v510
        %v512 = vld [vmem:[%s341] sm:$0x1]
        %v513 = vsub.f32 %v384, %v511
        %v514 = vsel %vm393, %v513, 0.0
        %515 = vadd.xlane.f32.xlu0 %v514
        %v516 = vpop.xlane.xlu0 %515
        %v517 = vrot.slane %v516, 4
        %v518 = vadd.f32 %v516, %v517
        %v519 = vrot.slane %v518, 2
        %v520 = vadd.f32 %v518, %v519
        %v521 = vrot.slane %v520, 1
        %v522 = vadd.f32 %v520, %v521
        %s523 = vtos %v522
        %v524 = vstv %s523
        %v525 = vadd.f32 %v512, %v524
        %vm526 = vcmask 0
        %527 = vst.msk [vmem:[%s341] sm:$0x1] %vm526, %v525
        %p528 = scmp.lt.s32.totalorder %s27, 1
        %s529 = scalar_select %p528, %s27, 1
        %p530 = scmp.lt.s32.totalorder %s28, 0
        %s531 = scalar_select %p530, %s28, 0
        %s532 = sadd.s32 %s531, %s529
        %s533 = smul.addr %s532, 4
        %s534 = scalar_lea.vmem %s2, %s533
        %p535 = scmp.lt.s32.totalorder %s27, 1
        %s536 = scalar_select %p535, %s27, 1
        %p537 = scmp.lt.s32.totalorder %s28, 0
        %s538 = scalar_select %p537, %s28, 0
        %s539 = sadd.s32 %s538, %s536
        %s540 = smul.addr %s539, 4
        %s541 = scalar_lea.vmem %s3, %s540
        %p542 = scmp.lt.s32.totalorder %s27, 1
        %s543 = scalar_select %p542, %s27, 1
        %p544 = scmp.lt.s32.totalorder %s28, 0
        %s545 = scalar_select %p544, %s28, 0
        %s546 = sadd.s32 %s545, %s543
        %s547 = scalar_lea.vmem %s4, %s546
        // Predicated region
        $region41: #{tpu_custom_call.1} parent=27 // pred_check
          %p548 = pneg %p129
        $region42: #{tpu_custom_call.1} parent=27 // pred_check_branch
          %550 = sbr.rel (%p548) target = $region44
        $region43: #{tpu_custom_call.1} parent=27 // pred_region
          _
        $region44: #{tpu_custom_call.1} parent=27 // pred_fallthru
          _
        // Predicated region
        $region45: #{tpu_custom_call.1} parent=27 // pred_check
          %p551 = pneg %p157
        $region46: #{tpu_custom_call.1} parent=27 // pred_check_branch
          %553 = sbr.rel (%p551) target = $region48
        $region47: #{tpu_custom_call.1} parent=27 // pred_region
          _
        $region48: #{tpu_custom_call.1} parent=27 // pred_fallthru
          _
        // Predicated region
        $region49: #{tpu_custom_call.1} parent=27 // pred_check
          %p554 = pneg %p185
        $region50: #{tpu_custom_call.1} parent=27 // pred_check_branch
          %556 = sbr.rel (%p554) target = $region52
        $region51: #{tpu_custom_call.1} parent=27 // pred_region
          _
        $region52: #{tpu_custom_call.1} parent=27 // pred_fallthru
          _
      $region28: #{tpu_custom_call.1} parent=5 // pred_fallthru
        _
      %p557 = scmp.le.s32.totalorder 2, %s17
      // Predicated region
      $region53: #{tpu_custom_call.1} parent=5 // pred_check
        %p558 = pneg %p557
      $region54: #{tpu_custom_call.1} parent=5 // pred_check_branch
        %560 = sbr.rel (%p558) target = $region56
      $region55: #{tpu_custom_call.1} parent=5 // pred_region
        %s561 = ssub.s32 %s17, 2
        // Predicated region
        $region57: #{tpu_custom_call.1} parent=55 // pred_check
          %p562 = pneg %p135
        $region58: #{tpu_custom_call.1} parent=55 // pred_check_branch
          %564 = sbr.rel (%p562) target = $region60
        $region59: #{tpu_custom_call.1} parent=55 // pred_region
          %p565 = scmp.lt.s32.totalorder %s30, 1
          %s566 = scalar_select %p565, %s30, 1
          %p567 = scmp.lt.s32.totalorder %s31, 0
          %s568 = scalar_select %p567, %s31, 0
          %s569 = sadd.s32 %s568, %s566
          %s570 = smul.addr %s569, 4
          %s571 = scalar_lea.vmem %s2, %s570
        $region60: #{tpu_custom_call.1} parent=55 // pred_fallthru
          _
        // Predicated region
        $region61: #{tpu_custom_call.1} parent=55 // pred_check
          %p572 = pneg %p163
        $region62: #{tpu_custom_call.1} parent=55 // pred_check_branch
          %574 = sbr.rel (%p572) target = $region64
        $region63: #{tpu_custom_call.1} parent=55 // pred_region
          %p575 = scmp.lt.s32.totalorder %s30, 1
          %s576 = scalar_select %p575, %s30, 1
          %p577 = scmp.lt.s32.totalorder %s31, 0
          %s578 = scalar_select %p577, %s31, 0
          %s579 = sadd.s32 %s578, %s576
          %s580 = smul.addr %s579, 4
          %s581 = scalar_lea.vmem %s3, %s580
        $region64: #{tpu_custom_call.1} parent=55 // pred_fallthru
          _
        // Predicated region
        $region65: #{tpu_custom_call.1} parent=55 // pred_check
          %p582 = pneg %p191
        $region66: #{tpu_custom_call.1} parent=55 // pred_check_branch
          %584 = sbr.rel (%p582) target = $region68
        $region67: #{tpu_custom_call.1} parent=55 // pred_region
          %p585 = scmp.lt.s32.totalorder %s30, 1
          %s586 = scalar_select %p585, %s30, 1
          %p587 = scmp.lt.s32.totalorder %s31, 0
          %s588 = scalar_select %p587, %s31, 0
          %s589 = sadd.s32 %s588, %s586
          %s590 = scalar_lea.vmem %s4, %s589
        $region68: #{tpu_custom_call.1} parent=55 // pred_fallthru
          _
      $region56: #{tpu_custom_call.1} parent=5 // pred_fallthru
        _
    $region6: #{tpu_custom_call.1} parent=1 // loop_footer
      %s21 = sadd.s32 1, %s17
    $region7: #{tpu_custom_call.1} parent=1 // loop_footer_branch
      %16 = sbr.rel target = $region3
    $region8: #{tpu_custom_call.1} parent=1 // loop_exit
      _
    %591 = vsyncpa [#allocation3], 1
    %s592 = scalar_lea.sflag [#allocation3], 1
    %593 = vsyncpa %s592, 1
    %594 = vsyncpa [#allocation5], 1
    %s595 = scalar_lea.sflag [#allocation5], 1
    %596 = vsyncpa %s595, 1

</llo_original>
